<compile_context>
chip_gen: v6e
topology: v6e:2x2x1
jax: 0.10.0
libtpu: 0.0.40
codegen_flags: <defaults>
</compile_context>

<pallas_src>
import math

import jax
import jax.numpy as jnp
from jax.experimental import pallas as pl
from jax.experimental.pallas import tpu as pltpu

_LANE = 128
_SUBLANE = 8
_TM_CAP = 1024          # max rows per grid step (f32 (1024,128) tile ~0.5 MiB)


def _cdiv(a, b):
    return (a + b - 1) // b


def _round_up(x, m):
    return ((x + m - 1) // m) * m


def _mlp_kernel(x_ref, w1_ref, b1_ref, w2_ref, b2_ref, o_ref):
    """Fused  Linear -> ReLU -> Linear.

    Both matmuls run on the MXU with f32 accumulation; bias add + ReLU are f32
    VPU ops.  When the wrapper feeds bf16 operands, the intermediate h is cast
    back to bf16 only at the second MXU call site.
    """
    h = jnp.dot(x_ref[...], w1_ref[...],
                preferred_element_type=jnp.float32) + b1_ref[...]
    h = jnp.maximum(h, 0.0)                      # ReLU in f32
    h = h.astype(w2_ref.dtype)                   # bf16 MXU operand when enabled
    y = jnp.dot(h, w2_ref[...],
                preferred_element_type=jnp.float32) + b2_ref[...]
    o_ref[...] = y.astype(o_ref.dtype)


def _choose_tm(M):
    """Equalized row tiles: G grid steps of (nearly) equal size, each a
    multiple of 8 sublanes.  Total row padding is bounded to <8 rows per tile,
    and tiny M collapses to a single grid step."""
    M = max(int(M), 1)
    g = max(1, _cdiv(M, _TM_CAP))
    return _round_up(_cdiv(M, g), _SUBLANE)


def _vmem_limit_bytes(tm, node_dim, E, x_bytes, w_bytes):
    """Scoped-VMEM request from lane-padded tile sizes: double-buffered x/out,
    the f32 layer-1 intermediate, resident weights/biases, plus headroom.
    No large floor; capped at 48 MiB so a v7x TC (64 MiB) keeps slack for
    compiler-internal scratch."""
    nd_pad = _round_up(node_dim, _LANE)
    e_pad = _round_up(E, _LANE)
    x_tile = tm * nd_pad * x_bytes
    h_tile = tm * e_pad * 4                      # f32 intermediate activation
    o_tile = tm * e_pad * 4
    weights = (_round_up(node_dim, _SUBLANE) * e_pad
               + _round_up(E, _SUBLANE) * e_pad) * w_bytes
    biases = 2 * _SUBLANE * e_pad * 4
    est = 2 * (x_tile + o_tile) + 2 * h_tile + 2 * (weights + biases) + (4 << 20)
    return int(min(max(est, 16 << 20), 48 << 20))


def init_embed_forward(cost_matrix, w1, b1, w2, b2, *, tm=None,
                       use_bf16_matmul=True):
    """Pallas forward for CustomizeATSPInitEmbedding.

    cost_matrix: [..., node_dim] float32  (node_dim == num_loc)
    w1: (node_dim, E), b1: (E,), w2: (E, E), b2: (E,)
    returns: [..., E] in cost_matrix.dtype
    """
    node_dim = cost_matrix.shape[-1]
    assert w1.ndim == 2 and w1.shape[0] == node_dim, (w1.shape, node_dim)
    E = w1.shape[1]
    assert w2.shape == (E, E), (w2.shape, E)
    assert b1.shape == (E,) and b2.shape == (E,), (b1.shape, b2.shape)

    lead_shape = cost_matrix.shape[:-1]
    M = math.prod(lead_shape) if lead_shape else 1
    out_dtype = jnp.dtype(cost_matrix.dtype)

    x = cost_matrix.reshape(M, node_dim)
    if use_bf16_matmul:
        # bf16 is the native MXU operand dtype on v5e/v6e/v7x; f32 matmuls are
        # decomposed into multiple passes there.  Accumulation stays f32.
        x = x.astype(jnp.bfloat16)
        w1 = w1.astype(jnp.bfloat16)
        w2 = w2.astype(jnp.bfloat16)
    b1_2d = b1.astype(jnp.float32).reshape(1, E)
    b2_2d = b2.astype(jnp.float32).reshape(1, E)

    if tm is None:
        tm = _choose_tm(M)
    tm = _round_up(max(int(tm), 1), _SUBLANE)

    # Pad rows so the grid divides evenly; padded rows are independent and are
    # sliced off afterwards (padding is <8 rows per tile with equalized tiles).
    M_pad = _round_up(M, tm)
    if M_pad != M:
        x = jnp.pad(x, ((0, M_pad - M), (0, 0)))
    grid = (M_pad // tm,)

    x_bytes = x.dtype.itemsize
    w_bytes = w1.dtype.itemsize

    cost = pl.CostEstimate(
        flops=2 * M * (node_dim + E) * E,
        transcendentals=0,
        bytes_accessed=(M * node_dim * x_bytes
                        + M * E * out_dtype.itemsize
                        + (node_dim * E + E * E) * w_bytes
                        + 2 * E * 4),
    )

    out = pl.pallas_call(
        _mlp_kernel,
        out_shape=jax.ShapeDtypeStruct((M_pad, E), out_dtype),
        grid_spec=pltpu.PrefetchScalarGridSpec(
            num_scalar_prefetch=0,
            grid=grid,
            in_specs=[
                pl.BlockSpec((tm, node_dim), lambda i: (i, 0)),
                # Constant index_maps: weights/biases are DMA'd once and stay
                # resident in VMEM across all grid steps.
                pl.BlockSpec((node_dim, E), lambda i: (0, 0)),
                pl.BlockSpec((1, E), lambda i: (0, 0)),
                pl.BlockSpec((E, E), lambda i: (0, 0)),
                pl.BlockSpec((1, E), lambda i: (0, 0)),
            ],
            out_specs=pl.BlockSpec((tm, E), lambda i: (i, 0)),
        ),
        compiler_params=pltpu.CompilerParams(
            dimension_semantics=("parallel",),
            vmem_limit_bytes=_vmem_limit_bytes(tm, node_dim, E, x_bytes, w_bytes),
        ),
        cost_estimate=cost,
    )(x, w1, b1_2d, w2, b2_2d)

    if M_pad != M:
        out = out[:M]
    return out.reshape(*lead_shape, E)


def make_params(key, node_dim, embed_dim):
    """Deterministic parameter init mimicking nn.Linear defaults
    (uniform in +/- 1/sqrt(fan_in)); stored as (in_features, out_features)."""
    k1, k2, k3, k4 = jax.random.split(key, 4)
    bound1 = 1.0 / float(jnp.sqrt(node_dim))
    bound2 = 1.0 / float(jnp.sqrt(embed_dim))
    w1 = jax.random.uniform(k1, (node_dim, embed_dim), jnp.float32, -bound1, bound1)
    b1 = jax.random.uniform(k2, (embed_dim,), jnp.float32, -bound1, bound1)
    w2 = jax.random.uniform(k3, (embed_dim, embed_dim), jnp.float32, -bound2, bound2)
    b2 = jax.random.uniform(k4, (embed_dim,), jnp.float32, -bound2, bound2)
    return w1, b1, w2, b2


if __name__ == "__main__":
    key = jax.random.PRNGKey(0)
    kp, kx = jax.random.split(key)

    # cost_matrix: (batch, num_loc, num_loc); node_dim = num_loc
    batch, num_loc, embed_dim = 2, 16, 128

    w1, b1, w2, b2 = make_params(kp, num_loc, embed_dim)
    cost_matrix = jax.random.uniform(kx, (batch, num_loc, num_loc), jnp.float32)

    out = init_embed_forward(cost_matrix, w1, b1, w2, b2)
    out = jax.block_until_ready(out)

    # reference check in plain f32 JAX (kernel uses bf16 MXU operands with f32
    # accumulation, so tolerance is ~1e-2 relative)
    ref = jnp.maximum(cost_matrix @ w1 + b1, 0.0) @ w2 + b2
    assert out.shape == (batch, num_loc, embed_dim)
    assert jnp.allclose(out, ref, atol=3e-2, rtol=3e-2), float(
        jnp.max(jnp.abs(out - ref)))

    print("KERNEL_OK")
</pallas_src>

<mosaic_0001>
module attributes {stable_mosaic.version = 11 : i64} {
  func.func @_mlp_kernel(%arg0: i32, %arg1: memref<32x16xbf16, #tpu.memory_space<vmem>>, %arg2: memref<16x128xbf16, #tpu.memory_space<vmem>>, %arg3: memref<1x128xf32, #tpu.memory_space<vmem>>, %arg4: memref<128x128xbf16, #tpu.memory_space<vmem>>, %arg5: memref<1x128xf32, #tpu.memory_space<vmem>>, %arg6: memref<32x128xf32, #tpu.memory_space<vmem>>) attributes {dimension_semantics = [#tpu.dimension_semantics<parallel>], iteration_bounds = array<i64: 1>, scalar_prefetch = 0 : i64, scratch_operands = 0 : i64, tpu.core_type = #tpu.core_type<tc>, window_params = [{transform_indices = @transform_0, window_bounds = array<i64: 32, 16>}, {pipeline_mode = #tpu.pipeline_mode<synchronous>, transform_indices = @transform_1, window_bounds = array<i64: 16, 128>}, {pipeline_mode = #tpu.pipeline_mode<synchronous>, transform_indices = @transform_2, window_bounds = array<i64: 1, 128>}, {pipeline_mode = #tpu.pipeline_mode<synchronous>, transform_indices = @transform_3, window_bounds = array<i64: 128, 128>}, {pipeline_mode = #tpu.pipeline_mode<synchronous>, transform_indices = @transform_4, window_bounds = array<i64: 1, 128>}, {transform_indices = @transform_5, window_bounds = array<i64: 32, 128>}]} {
    %c0 = arith.constant 0 : index
    %c0_0 = arith.constant 0 : index
    %0 = vector.load %arg1[%c0, %c0_0] : memref<32x16xbf16, #tpu.memory_space<vmem>>, vector<32x16xbf16>
    %c0_1 = arith.constant 0 : index
    %c0_2 = arith.constant 0 : index
    %1 = vector.load %arg2[%c0_1, %c0_2] : memref<16x128xbf16, #tpu.memory_space<vmem>>, vector<16x128xbf16>
    %cst = arith.constant dense<0.000000e+00> : vector<32x128xf32>
    %2 = tpu.matmul %0, %1, %cst {dimension_numbers = #tpu.dot_dimension_numbers<[1], [0], [0], [1], [0, 0, 1, 1], [], []>} : vector<32x16xbf16>, vector<16x128xbf16>, vector<32x128xf32> -> vector<32x128xf32>
    %c0_3 = arith.constant 0 : index
    %c0_4 = arith.constant 0 : index
    %3 = vector.load %arg3[%c0_3, %c0_4] : memref<1x128xf32, #tpu.memory_space<vmem>>, vector<1x128xf32>
    %4 = vector.broadcast %3 : vector<1x128xf32> to vector<32x128xf32>
    %5 = arith.addf %2, %4 : vector<32x128xf32>
    %cst_5 = arith.constant 0.000000e+00 : f32
    %6 = vector.broadcast %cst_5 : f32 to vector<32x128xf32>
    %7 = arith.maximumf %5, %6 : vector<32x128xf32>
    %8 = arith.truncf %7 : vector<32x128xf32> to vector<32x128xbf16>
    %c0_6 = arith.constant 0 : index
    %c0_7 = arith.constant 0 : index
    %9 = vector.load %arg4[%c0_6, %c0_7] : memref<128x128xbf16, #tpu.memory_space<vmem>>, vector<128x128xbf16>
    %cst_8 = arith.constant dense<0.000000e+00> : vector<32x128xf32>
    %10 = tpu.matmul %8, %9, %cst_8 {dimension_numbers = #tpu.dot_dimension_numbers<[1], [0], [0], [1], [0, 0, 1, 1], [], []>} : vector<32x128xbf16>, vector<128x128xbf16>, vector<32x128xf32> -> vector<32x128xf32>
    %c0_9 = arith.constant 0 : index
    %c0_10 = arith.constant 0 : index
    %11 = vector.load %arg5[%c0_9, %c0_10] : memref<1x128xf32, #tpu.memory_space<vmem>>, vector<1x128xf32>
    %12 = vector.broadcast %11 : vector<1x128xf32> to vector<32x128xf32>
    %13 = arith.addf %10, %12 : vector<32x128xf32>
    %c0_11 = arith.constant 0 : index
    %c0_12 = arith.constant 0 : index
    %14 = vector.load %arg6[%c0_11, %c0_12] : memref<32x128xf32, #tpu.memory_space<vmem>>, vector<32x128xf32>
    tpu.vector_store %arg6[%c0_11, %c0_12], %13 {strides = array<i32>} : memref<32x128xf32, #tpu.memory_space<vmem>>, vector<32x128xf32>,
    return
  }
  func.func @transform_0(%arg0: i32) -> (i32, i32) {
    %c0_i32 = arith.constant 0 : i32
    %c0_i32_0 = arith.constant 0 : i32
    return %arg0, %c0_i32 : i32, i32
  }
  func.func @transform_1(%arg0: i32) -> (i32, i32) {
    %c0_i32 = arith.constant 0 : i32
    %c0_i32_0 = arith.constant 0 : i32
    %c0_i32_1 = arith.constant 0 : i32
    return %c0_i32, %c0_i32_0 : i32, i32
  }
  func.func @transform_2(%arg0: i32) -> (i32, i32) {
    %c0_i32 = arith.constant 0 : i32
    %c0_i32_0 = arith.constant 0 : i32
    %c0_i32_1 = arith.constant 0 : i32
    return %c0_i32, %c0_i32_0 : i32, i32
  }
  func.func @transform_3(%arg0: i32) -> (i32, i32) {
    %c0_i32 = arith.constant 0 : i32
    %c0_i32_0 = arith.constant 0 : i32
    %c0_i32_1 = arith.constant 0 : i32
    return %c0_i32, %c0_i32_0 : i32, i32
  }
  func.func @transform_4(%arg0: i32) -> (i32, i32) {
    %c0_i32 = arith.constant 0 : i32
    %c0_i32_0 = arith.constant 0 : i32
    %c0_i32_1 = arith.constant 0 : i32
    return %c0_i32, %c0_i32_0 : i32, i32
  }
  func.func @transform_5(%arg0: i32) -> (i32, i32) {
    %c0_i32 = arith.constant 0 : i32
    %c0_i32_0 = arith.constant 0 : i32
    return %arg0, %c0_i32 : i32, i32
  }
}

</mosaic_0001>

<llo_original>
// kernel: tpu_custom_call.1
$region0: #{tpu_custom_call.1}
  #allocation0 [shape = 'u32[]', space=smem, size = 0x4, offset = 0x4, fixed_abs, tag = 'smem constant byte address 0x4 - core index']
  #allocation1 [shape = 'u32[144,128]{1,0:T(1,128)}', space=vmem, size = 0x12000, scoped, tag = 'internal scratch']
  %s0 = inlined_call_operand.vmem [shape: bf16[32,16], index: 0, kind: input, shape index: {}]
  %s1 = inlined_call_operand.vmem [shape: bf16[16,128], index: 1, kind: input, shape index: {}]
  %s2 = inlined_call_operand.vmem [shape: f32[1,128], index: 2, kind: input, shape index: {}]
  %s3 = inlined_call_operand.hbm [shape: bf16[128,128], index: 3, kind: input, shape index: {}]
  %s4 = inlined_call_operand.vmem [shape: f32[1,128], index: 4, kind: input, shape index: {}]
  %s5 = inlined_call_operand.hbm [shape: f32[32,128], index: 5, kind: output, shape index: {}]
  %s6 = sld [smem:[#allocation0]]
  $region34: #{tpu_custom_call.1} parent=0
    _
  %s8 = ssub.s32 1, %s6
  %s9 = scalar_select 0, %s8, %s6
  $region1: #{tpu_custom_call.1} parent=0
    #allocation2 [shape = 'u8[32768]{0}', space=vmem, size = 0x8000, scoped, tag = 'input window, operand 3, single buffered']
    #allocation3 [shape = 's32[1]{0}', space=sflag, size = 0x4, scoped, tag = 'scoped memory for tpu_custom_call.1']
    #allocation4 [shape = 's32[1]{0}', space=sflag, size = 0x4, scoped, tag = 'scoped memory for tpu_custom_call.1']
    #allocation5 [shape = 'u8[16384]{0}', space=vmem, size = 0x4000, scoped, tag = 'output window, operand 0, single buffered']
    %10 = vsyncpa [#allocation3], 0
    %11 = vsyncpa [#allocation4], 0
    // Predicated region
    $region2: #{tpu_custom_call.1} parent=1 // pred_check
      _
    $region3: #{tpu_custom_call.1} parent=1 // pred_check_branch
      %13 = sbr.rel (0) target = $region5
    $region4: #{tpu_custom_call.1} parent=1 // pred_region
      _
    $region5: #{tpu_custom_call.1} parent=1 // pred_fallthru
      _
    // Predicated region
    $region6: #{tpu_custom_call.1} parent=1 // pred_check
      _
    $region7: #{tpu_custom_call.1} parent=1 // pred_check_branch
      %15 = sbr.rel (0) target = $region9
    $region8: #{tpu_custom_call.1} parent=1 // pred_region
      _
    $region9: #{tpu_custom_call.1} parent=1 // pred_fallthru
      _
    // Predicated region
    $region10: #{tpu_custom_call.1} parent=1 // pred_check
      _
    $region11: #{tpu_custom_call.1} parent=1 // pred_check_branch
      %17 = sbr.rel (0) target = $region13
    $region12: #{tpu_custom_call.1} parent=1 // pred_region
      _
    $region13: #{tpu_custom_call.1} parent=1 // pred_fallthru
      _
    // Predicated region
    $region14: #{tpu_custom_call.1} parent=1 // pred_check
      _
    $region15: #{tpu_custom_call.1} parent=1 // pred_check_branch
      %19 = sbr.rel (0) target = $region17
    $region16: #{tpu_custom_call.1} parent=1 // pred_region
      %s21 = ssub.s32 1024, 1024
      %22 = vsyncadd [#allocation3], %s21
      %s23 = sshll.u32 [#allocation2], 4
      %s24 = int_to_ptr.vmem [resolvable:$true] %s23
      %29 = dma.hbm_to_vmem [thread:$0]  %s3, 1024, %s24, [#allocation3], 64, 64, 4
    $region17: #{tpu_custom_call.1} parent=1 // pred_fallthru
      _
    // Predicated region
    $region18: #{tpu_custom_call.1} parent=1 // pred_check
      _
    $region19: #{tpu_custom_call.1} parent=1 // pred_check_branch
      %31 = sbr.rel (0) target = $region21
    $region20: #{tpu_custom_call.1} parent=1 // pred_region
      _
    $region21: #{tpu_custom_call.1} parent=1 // pred_fallthru
      _
    // Predicated region
    $region22: #{tpu_custom_call.1} parent=1 // pred_check
      _
    $region23: #{tpu_custom_call.1} parent=1 // pred_check_branch
      %33 = sbr.rel (0) target = $region25
    $region24: #{tpu_custom_call.1} parent=1 // pred_region
      %34 = dma.done [#allocation3], 1024
    $region25: #{tpu_custom_call.1} parent=1 // pred_fallthru
      _
    %v36 = vld [vmem:[%s0] sm:$0xf]
    %v37 = vld [vmem:[%s0 + $0x4] sm:$0xf]
    %v38 = vld [vmem:[%s0 + $0x8] sm:$0xf]
    %v39 = vld [vmem:[%s0 + $0xc] sm:$0xf]
    %v40 = vld [vmem:[%s1] sm:$0xf]
    %v41 = vld [vmem:[%s1 + $0x4] sm:$0xf]
    %v42 = vld [vmem:[%s2] sm:$0x1]
    %v44 = vlaneseq
    %v45 = vshrl.u32 %v44, 7
    %v46 = vsub.s32 0, %v45
    %v47 = vrot.slane %v42, %v46
    %v53 = vunpack.c.l.b16 %v36
    %v54 = vunpack.c.l.b16 %v37
    %v55 = vunpack.c.l.b16 %v38
    %v56 = vunpack.c.l.b16 %v39
    %v57 = vpack.c.b16 %v54, %v53
    %v58 = vpack.c.b16 %v56, %v55
    %v61 = vunpack.c.l.b16 %v40
    %v62 = vunpack.c.l.b16 %v41
    %v63 = vpack.c.b16 %v62, %v61
    %vm65 = vcmask 130048
    %v67 = vsel %vm65, %v57, 0
    %v70 = vsel %vm65, %v58, 0
    %72 = vmatprep.subr.bf16.mxu0 0
    %73 = vmatpush1.bf16.msra.mxu0 0
    %74 = vmatprep.subr.bf16.mxu0 0
    %75 = vmatpush1.bf16.msra.mxu0 0
    %76 = vmatprep.subr.bf16.mxu0 0
    %77 = vmatpush1.bf16.msra.mxu0 0
    %78 = vmatprep.subr.bf16.mxu0 0
    %79 = vmatpush1.bf16.msra.mxu0 0
    %80 = vmatprep.subr.bf16.mxu0 0
    %81 = vmatpush1.bf16.msra.mxu0 0
    %82 = vmatprep.subr.bf16.mxu0 0
    %83 = vmatpush1.bf16.msra.mxu0 0
    %84 = vmatprep.subr.bf16.mxu0 0
    %85 = vmatpush1.bf16.msra.mxu0 0
    %86 = vmatprep.subr.bf16.mxu0 0
    %87 = vmatpush1.bf16.msra.mxu0 %v63
    %88 = vmatprep.subr.bf16.mxu0 0
    %89 = vmatpush2.bf16.msra.mxu0 0
    %90 = vmatprep.subr.bf16.mxu0 0
    %91 = vmatpush2.bf16.msra.mxu0 0
    %92 = vmatprep.subr.bf16.mxu0 0
    %93 = vmatpush2.bf16.msra.mxu0 0
    %94 = vmatprep.subr.bf16.mxu0 0
    %95 = vmatpush2.bf16.msra.mxu0 0
    %96 = vmatprep.subr.bf16.mxu0 0
    %97 = vmatpush2.bf16.msra.mxu0 0
    %98 = vmatprep.subr.bf16.mxu0 0
    %99 = vmatpush2.bf16.msra.mxu0 0
    %100 = vmatprep.subr.bf16.mxu0 0
    %101 = vmatpush2.bf16.msra.mxu0 0
    %102 = vmatprep.subr.bf16.mxu0 0
    %103 = vmatpush2.bf16.msra.mxu0 0
    %104 = vmatprep.mubr.bf16.mxu0 0
    %105 = vmatmul.mubr.bf16.gmra.mxu0 %v67
    %v106 = vpop.f32.mrf.mxu0
    %v107 = vadd.f32 %v47, %v106
    %v108 = vpop.f32.mrf.mxu0
    %v109 = vpop.f32.mrf.mxu0
    %v110 = vadd.f32 %v47, %v109
    %v111 = vpop.f32.mrf.mxu0
    %112 = vmatprep.mubr.bf16.mxu0 0
    %113 = vmatmul.mubr.bf16.gmra.mxu0 %v70
    %v114 = vpop.f32.mrf.mxu0
    %v115 = vadd.f32 %v47, %v114
    %v116 = vpop.f32.mrf.mxu0
    %v117 = vpop.f32.mrf.mxu0
    %v118 = vadd.f32 %v47, %v117
    %v119 = vpop.f32.mrf.mxu0
    %120 = vdwg.mxu0
    %v121 = vmax.f32 %v107, 0.0
    %v122 = vmax.f32 %v110, 0.0
    %v123 = vmax.f32 %v115, 0.0
    %v124 = vmax.f32 %v118, 0.0
    %v125 = vpack.c.bf16 %v122, %v121
    %v126 = vpack.c.bf16 %v124, %v123
    %v127 = vld [vmem:[#allocation2] sm:$0xf]
    %v128 = vld [vmem:[#allocation2 + $0x4] sm:$0xf]
    %v129 = vld [vmem:[#allocation2 + $0x8] sm:$0xf]
    %v130 = vld [vmem:[#allocation2 + $0xc] sm:$0xf]
    %v131 = vld [vmem:[#allocation2 + $0x10] sm:$0xf]
    %v132 = vld [vmem:[#allocation2 + $0x14] sm:$0xf]
    %v133 = vld [vmem:[#allocation2 + $0x18] sm:$0xf]
    %v134 = vld [vmem:[#allocation2 + $0x1c] sm:$0xf]
    %v135 = vld [vmem:[#allocation2 + $0x20] sm:$0xf]
    %v136 = vld [vmem:[#allocation2 + $0x24] sm:$0xf]
    %v137 = vld [vmem:[#allocation2 + $0x28] sm:$0xf]
    %v138 = vld [vmem:[#allocation2 + $0x2c] sm:$0xf]
    %v139 = vld [vmem:[#allocation2 + $0x30] sm:$0xf]
    %v140 = vld [vmem:[#allocation2 + $0x34] sm:$0xf]
    %v141 = vld [vmem:[#allocation2 + $0x38] sm:$0xf]
    %v142 = vld [vmem:[#allocation2 + $0x3c] sm:$0xf]
    %v143 = vld [vmem:[%s4] sm:$0x1]
    %v145 = vlaneseq
    %v146 = vshrl.u32 %v145, 7
    %v147 = vsub.s32 0, %v146
    %v148 = vrot.slane %v143, %v147
    %v166 = vunpack.c.l.b16 %v127
    %v167 = vunpack.c.l.b16 %v128
    %v168 = vunpack.c.l.b16 %v129
    %v169 = vunpack.c.l.b16 %v130
    %v170 = vunpack.c.l.b16 %v131
    %v171 = vunpack.c.l.b16 %v132
    %v172 = vunpack.c.l.b16 %v133
    %v173 = vunpack.c.l.b16 %v134
    %v174 = vunpack.c.l.b16 %v135
    %v175 = vunpack.c.l.b16 %v136
    %v176 = vunpack.c.l.b16 %v137
    %v177 = vunpack.c.l.b16 %v138
    %v178 = vunpack.c.l.b16 %v139
    %v179 = vunpack.c.l.b16 %v140
    %v180 = vunpack.c.l.b16 %v141
    %v181 = vunpack.c.l.b16 %v142
    %v182 = vpack.c.b16 %v167, %v166
    %v183 = vpack.c.b16 %v169, %v168
    %v184 = vpack.c.b16 %v171, %v170
    %v185 = vpack.c.b16 %v173, %v172
    %v186 = vpack.c.b16 %v175, %v174
    %v187 = vpack.c.b16 %v177, %v176
    %v188 = vpack.c.b16 %v179, %v178
    %v189 = vpack.c.b16 %v181, %v180
    %198 = vmatprep.subr.bf16.mxu0 0
    %199 = vmatpush1.bf16.msra.mxu0 %v189
    %200 = vmatprep.subr.bf16.mxu0 0
    %201 = vmatpush1.bf16.msra.mxu0 %v188
    %202 = vmatprep.subr.bf16.mxu0 0
    %203 = vmatpush1.bf16.msra.mxu0 %v187
    %204 = vmatprep.subr.bf16.mxu0 0
    %205 = vmatpush1.bf16.msra.mxu0 %v186
    %206 = vmatprep.subr.bf16.mxu0 0
    %207 = vmatpush1.bf16.msra.mxu0 %v185
    %208 = vmatprep.subr.bf16.mxu0 0
    %209 = vmatpush1.bf16.msra.mxu0 %v184
    %210 = vmatprep.subr.bf16.mxu0 0
    %211 = vmatpush1.bf16.msra.mxu0 %v183
    %212 = vmatprep.subr.bf16.mxu0 0
    %213 = vmatpush1.bf16.msra.mxu0 %v182
    %214 = vmatprep.subr.bf16.mxu0 0
    %215 = vmatpush2.bf16.msra.mxu0 0
    %216 = vmatprep.subr.bf16.mxu0 0
    %217 = vmatpush2.bf16.msra.mxu0 0
    %218 = vmatprep.subr.bf16.mxu0 0
    %219 = vmatpush2.bf16.msra.mxu0 0
    %220 = vmatprep.subr.bf16.mxu0 0
    %221 = vmatpush2.bf16.msra.mxu0 0
    %222 = vmatprep.subr.bf16.mxu0 0
    %223 = vmatpush2.bf16.msra.mxu0 0
    %224 = vmatprep.subr.bf16.mxu0 0
    %225 = vmatpush2.bf16.msra.mxu0 0
    %226 = vmatprep.subr.bf16.mxu0 0
    %227 = vmatpush2.bf16.msra.mxu0 0
    %228 = vmatprep.subr.bf16.mxu0 0
    %229 = vmatpush2.bf16.msra.mxu0 0
    %230 = vmatprep.mubr.bf16.mxu0 0
    %231 = vmatmul.mubr.bf16.gmra.mxu0 %v125
    %v232 = vpop.f32.mrf.mxu0
    %v233 = vadd.f32 %v148, %v232
    %v234 = vpop.f32.mrf.mxu0
    %v235 = vpop.f32.mrf.mxu0
    %v236 = vadd.f32 %v148, %v235
    %v237 = vpop.f32.mrf.mxu0
    %238 = vmatprep.mubr.bf16.mxu0 0
    %239 = vmatmul.mubr.bf16.gmra.mxu0 %v126
    %v240 = vpop.f32.mrf.mxu0
    %v241 = vadd.f32 %v148, %v240
    %v242 = vpop.f32.mrf.mxu0
    %v243 = vpop.f32.mrf.mxu0
    %v244 = vadd.f32 %v148, %v243
    %v245 = vpop.f32.mrf.mxu0
    %246 = vdwg.mxu0
    %247 = vst [vmem:[#allocation5] sm:$0xff] %v233
    %248 = vst [vmem:[#allocation5 + $0x8] sm:$0xff] %v236
    %249 = vst [vmem:[#allocation5 + $0x10] sm:$0xff] %v241
    %250 = vst [vmem:[#allocation5 + $0x18] sm:$0xff] %v244
    // Predicated region
    $region26: #{tpu_custom_call.1} parent=1 // pred_check
      _
    $region27: #{tpu_custom_call.1} parent=1 // pred_check_branch
      %252 = sbr.rel (0) target = $region29
    $region28: #{tpu_custom_call.1} parent=1 // pred_region
      %s254 = ssub.s32 512, 512
      %255 = vsyncadd [#allocation4], %s254
      %s256 = sshll.u32 [#allocation5], 4
      %s257 = int_to_ptr.vmem [resolvable:$true] %s256
      %262 = dma.vmem_to_hbm [thread:$0]  %s257, 512, %s5, [#allocation4], 128, 128, 8
    $region29: #{tpu_custom_call.1} parent=1 // pred_fallthru
      _
    // Predicated region
    $region30: #{tpu_custom_call.1} parent=1 // pred_check
      _
    $region31: #{tpu_custom_call.1} parent=1 // pred_check_branch
      %264 = sbr.rel (0) target = $region33
    $region32: #{tpu_custom_call.1} parent=1 // pred_region
      %265 = dma.done [#allocation4], 512
    $region33: #{tpu_custom_call.1} parent=1 // pred_fallthru
      _
    %266 = vsyncpa [#allocation3], 1
    %267 = vsyncpa [#allocation4], 1

</llo_original>
